<compile_context>
chip_gen: v5e
topology: v5e:2x2
jax: 0.10.0
libtpu: 0.0.40
codegen_flags: <defaults>
</compile_context>

<pallas_src>
import math

import numpy as np

import jax
import jax.numpy as jnp
from jax.experimental import pallas as pl
from jax.experimental.pallas import tpu as pltpu


# ---------------------------------------------------------------------------
# Kernels
# ---------------------------------------------------------------------------

def _normalize_pair_kernel(s_ref, t_ref, mean_ref, inv_ref, os_ref, ot_ref):
    # Elementwise (x - mean) * inv_std for both tensors; (1, L) stats broadcast
    # over the row tile.  Compute in f32, store in the output dtype.
    m = mean_ref[...]
    inv = inv_ref[...]
    os_ref[...] = ((s_ref[...].astype(jnp.float32) - m) * inv).astype(os_ref.dtype)
    ot_ref[...] = ((t_ref[...].astype(jnp.float32) - m) * inv).astype(ot_ref.dtype)


def _normalize_one_kernel(x_ref, mean_ref, inv_ref, o_ref):
    m = mean_ref[...]
    inv = inv_ref[...]
    o_ref[...] = ((x_ref[...].astype(jnp.float32) - m) * inv).astype(o_ref.dtype)


# ---------------------------------------------------------------------------
# Launch wrapper
# ---------------------------------------------------------------------------

_TARGET_BLOCK_BYTES = 2 << 20      # ~2 MiB per tile -> ~16 MiB pipelined (2in+2out)
_VMEM_LIMIT_BYTES = 32 << 20       # explicit: > v5e's 16 MiB default, <= v7x 64 MiB


def _pack_factor(R, C, itemsize, target_block_bytes=_TARGET_BLOCK_BYTES):
    """Pixels folded into the lane axis so the last dim is a multiple of 128."""
    if C % 128 == 0:
        return 1
    p = math.lcm(C, 128) // C
    if R % p != 0:
        return 1                                  # correct non-packed fallback
    if 8 * p * C * itemsize > target_block_bytes:
        return 1                                  # packed row too wide for budget
    return p


def _normalize_packed(xs, mean_l, inv_l,
                      target_block_bytes=_TARGET_BLOCK_BYTES,
                      vmem_limit_bytes=_VMEM_LIMIT_BYTES):
    """Normalize one or two identically-shaped (Rp, L) matrices in one call."""
    n = len(xs)
    Rp, L = xs[0].shape
    dtype = xs[0].dtype
    itemsize = jnp.dtype(dtype).itemsize

    # Row tile from a per-block byte budget (multiple of 8 sublanes).
    rows = max(8, (target_block_bytes // (L * itemsize)) // 8 * 8)
    # v7x megacore: guarantee >= 2 grid steps so both TensorCores stream HBM.
    if rows >= Rp and Rp >= 16:
        rows = max(8, (Rp // 2) // 8 * 8)
    row_tile = Rp if Rp < rows else rows
    grid = (pl.cdiv(Rp, row_tile),)               # partial last block is fine

    feat_spec = pl.BlockSpec((row_tile, L), lambda i: (i, 0))
    stat_spec = pl.BlockSpec((1, L), lambda i: (0, 0))     # resident across grid

    kernel = _normalize_pair_kernel if n == 2 else _normalize_one_kernel
    out_shape = tuple(jax.ShapeDtypeStruct((Rp, L), dtype) for _ in range(n))

    elems = n * Rp * L
    cost = pl.CostEstimate(
        flops=2 * elems,
        transcendentals=0,
        bytes_accessed=2 * elems * itemsize + 2 * L * 4,
    )

    outs = pl.pallas_call(
        kernel,
        out_shape=out_shape,
        grid_spec=pltpu.PrefetchScalarGridSpec(
            num_scalar_prefetch=0,
            grid=grid,
            in_specs=[feat_spec] * n + [stat_spec, stat_spec],
            out_specs=[feat_spec] * n,
        ),
        compiler_params=pltpu.CompilerParams(
            dimension_semantics=("parallel",),    # shard the row axis across TCs
            vmem_limit_bytes=vmem_limit_bytes,
        ),
        cost_estimate=cost,
    )(*xs, mean_l, inv_l)
    return outs


# ---------------------------------------------------------------------------
# Encoder
# ---------------------------------------------------------------------------

class Encoder:
    """JAX/Pallas port of fixmypose Encoder (feature-input path)."""

    def __init__(self, feature_size, normalized=False, key=None):
        self.feature_size = feature_size
        self.normalized = normalized
        self._stats_cache = {}
        if normalized:
            # Deterministic synthetic stand-ins for feat_mean.npy / feat_std.npy.
            if key is None:
                key = jax.random.PRNGKey(0)
            km, ks = jax.random.split(key)
            self.feat_mean = jax.random.normal(km, (feature_size,), jnp.float32)
            # keep std strictly positive and away from zero
            self.feat_std = jax.random.uniform(
                ks, (feature_size,), jnp.float32, minval=0.5, maxval=1.5
            )
            # reciprocal computed in float64 on host, then cast back to f32 so
            # the multiply in the hot loop matches a divide to < 1 ulp extra.
            self.feat_inv_std = jnp.asarray(
                1.0 / np.asarray(self.feat_std, dtype=np.float64), jnp.float32
            )

    @property
    def ctx_dim(self):
        return self.feature_size

    # -- lane-tiled stats, built once per packing factor and cached -----------
    def _lane_stats(self, p):
        if p not in self._stats_cache:
            L = self.feature_size * p
            mean_l = jnp.tile(self.feat_mean.astype(jnp.float32), p).reshape(1, L)
            inv_l = jnp.tile(self.feat_inv_std.astype(jnp.float32), p).reshape(1, L)
            self._stats_cache[p] = (mean_l, inv_l)
        return self._stats_cache[p]

    def _normalize_2d(self, x2):
        R, C = x2.shape
        assert C == self.feature_size
        itemsize = jnp.dtype(x2.dtype).itemsize
        p = _pack_factor(R, C, itemsize)
        L = C * p
        mean_l, inv_l = self._lane_stats(p)
        (out,) = _normalize_packed((x2.reshape(R // p, L),), mean_l, inv_l)
        return out.reshape(R, C)

    def _normalize_pair_2d(self, s2, t2):
        R, C = s2.shape
        assert C == self.feature_size
        itemsize = jnp.dtype(s2.dtype).itemsize
        p = _pack_factor(R, C, itemsize)
        L = C * p
        mean_l, inv_l = self._lane_stats(p)
        os_, ot_ = _normalize_packed(
            (s2.reshape(R // p, L), t2.reshape(R // p, L)), mean_l, inv_l
        )
        return os_.reshape(R, C), ot_.reshape(R, C)

    def __call__(self, src, trg):
        # args.img_type == 'feat': inputs are precomputed backbone features (NHWC).
        # TODO(synk): ResNet-101 extractor branch not translatable without weights.
        Bs, Cs = src.shape[0], src.shape[-1]
        Bt, Ct = trg.shape[0], trg.shape[-1]
        src_feat = src.reshape(Bs, -1, Cs)
        trg_feat = trg.reshape(Bt, -1, Ct)
        if not self.normalized:
            return src_feat, trg_feat

        Ns, Nt = src_feat.shape[1], trg_feat.shape[1]
        s2 = src_feat.reshape(Bs * Ns, Cs)
        t2 = trg_feat.reshape(Bt * Nt, Ct)

        if s2.shape == t2.shape and s2.dtype == t2.dtype:
            s_n, t_n = self._normalize_pair_2d(s2, t2)          # fused, 1 call
        else:
            s_n = self._normalize_2d(s2)                        # per-tensor
            t_n = self._normalize_2d(t2)

        return s_n.reshape(Bs, Ns, Cs), t_n.reshape(Bt, Nt, Ct)


# ---------------------------------------------------------------------------
# Self-test
# ---------------------------------------------------------------------------

if __name__ == "__main__":
    key = jax.random.PRNGKey(0)
    k_src, k_trg, k_trg2, k_enc = jax.random.split(key, 4)

    # Small shapes: B=2, spatial 4x4, feature_size C=32 (NHWC features).
    B, H, W, C = 2, 4, 4, 32
    src = jax.random.normal(k_src, (B, H, W, C), jnp.float32)
    trg = jax.random.normal(k_trg, (B, H, W, C), jnp.float32)

    enc = Encoder(feature_size=C, normalized=True, key=k_enc)

    # --- fused path (matching src/trg shapes) ---
    src_ctx, trg_ctx = enc(src, trg)
    jax.block_until_ready((src_ctx, trg_ctx))

    ref_src = (src.reshape(B, -1, C) - enc.feat_mean) / enc.feat_std
    ref_trg = (trg.reshape(B, -1, C) - enc.feat_mean) / enc.feat_std
    assert src_ctx.shape == (B, H * W, C) and trg_ctx.shape == (B, H * W, C)
    assert jnp.allclose(src_ctx, ref_src, atol=1e-5, rtol=1e-5)
    assert jnp.allclose(trg_ctx, ref_trg, atol=1e-5, rtol=1e-5)

    # --- mismatched-shape path (src 4x4, trg 2x2) ---
    trg_small = jax.random.normal(k_trg2, (B, 2, 2, C), jnp.float32)
    src_ctx2, trg_ctx2 = enc(src, trg_small)
    jax.block_until_ready((src_ctx2, trg_ctx2))

    ref_trg_small = (trg_small.reshape(B, -1, C) - enc.feat_mean) / enc.feat_std
    assert trg_ctx2.shape == (B, 4, C)
    assert jnp.allclose(src_ctx2, ref_src, atol=1e-5, rtol=1e-5)
    assert jnp.allclose(trg_ctx2, ref_trg_small, atol=1e-5, rtol=1e-5)

    print("KERNEL_OK")
</pallas_src>

<mosaic_0001>
module attributes {stable_mosaic.version = 11 : i64} {
  func.func @_normalize_pair_kernel(%arg0: i32, %arg1: memref<8x128xf32, #tpu.memory_space<vmem>>, %arg2: memref<8x128xf32, #tpu.memory_space<vmem>>, %arg3: memref<1x128xf32, #tpu.memory_space<vmem>>, %arg4: memref<1x128xf32, #tpu.memory_space<vmem>>, %arg5: memref<8x128xf32, #tpu.memory_space<vmem>>, %arg6: memref<8x128xf32, #tpu.memory_space<vmem>>) attributes {dimension_semantics = [#tpu.dimension_semantics<parallel>], iteration_bounds = array<i64: 1>, scalar_prefetch = 0 : i64, scratch_operands = 0 : i64, tpu.core_type = #tpu.core_type<tc>, window_params = [{transform_indices = @transform_0, window_bounds = array<i64: 8, 128>}, {transform_indices = @transform_1, window_bounds = array<i64: 8, 128>}, {pipeline_mode = #tpu.pipeline_mode<synchronous>, transform_indices = @transform_2, window_bounds = array<i64: 1, 128>}, {pipeline_mode = #tpu.pipeline_mode<synchronous>, transform_indices = @transform_3, window_bounds = array<i64: 1, 128>}, {transform_indices = @transform_4, window_bounds = array<i64: 8, 128>}, {transform_indices = @transform_5, window_bounds = array<i64: 8, 128>}]} {
    %c0 = arith.constant 0 : index
    %c0_0 = arith.constant 0 : index
    %0 = vector.load %arg3[%c0, %c0_0] : memref<1x128xf32, #tpu.memory_space<vmem>>, vector<1x128xf32>
    %c0_1 = arith.constant 0 : index
    %c0_2 = arith.constant 0 : index
    %1 = vector.load %arg4[%c0_1, %c0_2] : memref<1x128xf32, #tpu.memory_space<vmem>>, vector<1x128xf32>
    %c0_3 = arith.constant 0 : index
    %c0_4 = arith.constant 0 : index
    %2 = vector.load %arg1[%c0_3, %c0_4] : memref<8x128xf32, #tpu.memory_space<vmem>>, vector<8x128xf32>
    %3 = vector.broadcast %0 : vector<1x128xf32> to vector<8x128xf32>
    %4 = arith.subf %2, %3 : vector<8x128xf32>
    %5 = vector.broadcast %1 : vector<1x128xf32> to vector<8x128xf32>
    %6 = arith.mulf %4, %5 : vector<8x128xf32>
    %c0_5 = arith.constant 0 : index
    %c0_6 = arith.constant 0 : index
    %7 = vector.load %arg5[%c0_5, %c0_6] : memref<8x128xf32, #tpu.memory_space<vmem>>, vector<8x128xf32>
    tpu.vector_store %arg5[%c0_5, %c0_6], %6 {strides = array<i32>} : memref<8x128xf32, #tpu.memory_space<vmem>>, vector<8x128xf32>,
    %c0_7 = arith.constant 0 : index
    %c0_8 = arith.constant 0 : index
    %8 = vector.load %arg2[%c0_7, %c0_8] : memref<8x128xf32, #tpu.memory_space<vmem>>, vector<8x128xf32>
    %9 = vector.broadcast %0 : vector<1x128xf32> to vector<8x128xf32>
    %10 = arith.subf %8, %9 : vector<8x128xf32>
    %11 = vector.broadcast %1 : vector<1x128xf32> to vector<8x128xf32>
    %12 = arith.mulf %10, %11 : vector<8x128xf32>
    %c0_9 = arith.constant 0 : index
    %c0_10 = arith.constant 0 : index
    %13 = vector.load %arg6[%c0_9, %c0_10] : memref<8x128xf32, #tpu.memory_space<vmem>>, vector<8x128xf32>
    tpu.vector_store %arg6[%c0_9, %c0_10], %12 {strides = array<i32>} : memref<8x128xf32, #tpu.memory_space<vmem>>, vector<8x128xf32>,
    return
  }
  func.func @transform_0(%arg0: i32) -> (i32, i32) {
    %c0_i32 = arith.constant 0 : i32
    %c0_i32_0 = arith.constant 0 : i32
    return %arg0, %c0_i32 : i32, i32
  }
  func.func @transform_1(%arg0: i32) -> (i32, i32) {
    %c0_i32 = arith.constant 0 : i32
    %c0_i32_0 = arith.constant 0 : i32
    return %arg0, %c0_i32 : i32, i32
  }
  func.func @transform_2(%arg0: i32) -> (i32, i32) {
    %c0_i32 = arith.constant 0 : i32
    %c0_i32_0 = arith.constant 0 : i32
    %c0_i32_1 = arith.constant 0 : i32
    return %c0_i32, %c0_i32_0 : i32, i32
  }
  func.func @transform_3(%arg0: i32) -> (i32, i32) {
    %c0_i32 = arith.constant 0 : i32
    %c0_i32_0 = arith.constant 0 : i32
    %c0_i32_1 = arith.constant 0 : i32
    return %c0_i32, %c0_i32_0 : i32, i32
  }
  func.func @transform_4(%arg0: i32) -> (i32, i32) {
    %c0_i32 = arith.constant 0 : i32
    %c0_i32_0 = arith.constant 0 : i32
    return %arg0, %c0_i32 : i32, i32
  }
  func.func @transform_5(%arg0: i32) -> (i32, i32) {
    %c0_i32 = arith.constant 0 : i32
    %c0_i32_0 = arith.constant 0 : i32
    return %arg0, %c0_i32 : i32, i32
  }
}

</mosaic_0001>

<llo_original>
// kernel: tpu_custom_call.1
$region0: #{tpu_custom_call.1}
  #allocation0 [shape = 'u32[]', space=smem, size = 0x4, offset = 0x4, fixed_abs, tag = 'smem constant byte address 0x4 - core index']
  #allocation1 [shape = 'u32[72,128]{1,0:T(1,128)}', space=vmem, size = 0x9000, scoped, tag = 'internal scratch']
  %s0 = inlined_call_operand.hbm [shape: f32[8,128], index: 0, kind: input, shape index: {}]
  %s1 = inlined_call_operand.hbm [shape: f32[8,128], index: 1, kind: input, shape index: {}]
  %s2 = inlined_call_operand.vmem [shape: f32[1,128], index: 2, kind: input, shape index: {}]
  %s3 = inlined_call_operand.vmem [shape: f32[1,128], index: 3, kind: input, shape index: {}]
  %s4 = inlined_call_operand.hbm [shape: f32[8,128], index: 4, kind: output, shape index: {0}]
  %s5 = inlined_call_operand.hbm [shape: f32[8,128], index: 5, kind: output, shape index: {1}]
  %6 = xla_tuple %s4, %s5
  %s7 = sld [smem:[#allocation0]]
  $region42: #{tpu_custom_call.1} parent=0
    _
  %s9 = ssub.s32 1, %s7
  %s10 = scalar_select 0, %s9, %s7
  $region1: #{tpu_custom_call.1} parent=0
    #allocation2 [shape = 'u8[4096]{0}', space=vmem, size = 0x1000, scoped, tag = 'input window, operand 0, single buffered']
    #allocation3 [shape = 's32[1]{0}', space=sflag, size = 0x4, scoped, tag = 'scoped memory for tpu_custom_call.1']
    #allocation4 [shape = 's32[1]{0}', space=sflag, size = 0x4, scoped, tag = 'scoped memory for tpu_custom_call.1']
    #allocation5 [shape = 'u8[4096]{0}', space=vmem, size = 0x1000, scoped, tag = 'input window, operand 1, single buffered']
    #allocation6 [shape = 's32[1]{0}', space=sflag, size = 0x4, scoped, tag = 'scoped memory for tpu_custom_call.1']
    #allocation7 [shape = 'u8[4096]{0}', space=vmem, size = 0x1000, scoped, tag = 'output window, operand 0, single buffered']
    #allocation8 [shape = 'u8[4096]{0}', space=vmem, size = 0x1000, scoped, tag = 'output window, operand 1, single buffered']
    #allocation9 [shape = 's32[1]{0}', space=sflag, size = 0x4, scoped, tag = 'scoped memory for tpu_custom_call.1']
    %11 = vsyncpa [#allocation3], 0
    %12 = vsyncpa [#allocation6], 0
    %13 = vsyncpa [#allocation4], 0
    %14 = vsyncpa [#allocation9], 0
    // Predicated region
    $region2: #{tpu_custom_call.1} parent=1 // pred_check
      _
    $region3: #{tpu_custom_call.1} parent=1 // pred_check_branch
      %16 = sbr.rel (0) target = $region5
    $region4: #{tpu_custom_call.1} parent=1 // pred_region
      %18 = vsyncadd [#allocation3], 0
      %s20 = sshll.u32 %s0, 4
      %s21 = int_to_ptr.hbm [resolvable:$true] %s20
      %s22 = sshll.u32 [#allocation2], 4
      %s23 = int_to_ptr.vmem [resolvable:$true] %s22
      %25 = dma.hbm_to_vmem [thread:$0]  %s21, 128, %s23, [#allocation3]
    $region5: #{tpu_custom_call.1} parent=1 // pred_fallthru
      _
    // Predicated region
    $region6: #{tpu_custom_call.1} parent=1 // pred_check
      _
    $region7: #{tpu_custom_call.1} parent=1 // pred_check_branch
      %27 = sbr.rel (0) target = $region9
    $region8: #{tpu_custom_call.1} parent=1 // pred_region
      %29 = vsyncadd [#allocation6], 0
      %s31 = sshll.u32 %s1, 4
      %s32 = int_to_ptr.hbm [resolvable:$true] %s31
      %s33 = sshll.u32 [#allocation5], 4
      %s34 = int_to_ptr.vmem [resolvable:$true] %s33
      %36 = dma.hbm_to_vmem [thread:$0]  %s32, 128, %s34, [#allocation6]
    $region9: #{tpu_custom_call.1} parent=1 // pred_fallthru
      _
    // Predicated region
    $region10: #{tpu_custom_call.1} parent=1 // pred_check
      _
    $region11: #{tpu_custom_call.1} parent=1 // pred_check_branch
      %38 = sbr.rel (0) target = $region13
    $region12: #{tpu_custom_call.1} parent=1 // pred_region
      _
    $region13: #{tpu_custom_call.1} parent=1 // pred_fallthru
      _
    // Predicated region
    $region14: #{tpu_custom_call.1} parent=1 // pred_check
      _
    $region15: #{tpu_custom_call.1} parent=1 // pred_check_branch
      %40 = sbr.rel (0) target = $region17
    $region16: #{tpu_custom_call.1} parent=1 // pred_region
      _
    $region17: #{tpu_custom_call.1} parent=1 // pred_fallthru
      _
    // Predicated region
    $region18: #{tpu_custom_call.1} parent=1 // pred_check
      _
    $region19: #{tpu_custom_call.1} parent=1 // pred_check_branch
      %42 = sbr.rel (0) target = $region21
    $region20: #{tpu_custom_call.1} parent=1 // pred_region
      %44 = dma.done [#allocation3], 128
    $region21: #{tpu_custom_call.1} parent=1 // pred_fallthru
      _
    // Predicated region
    $region22: #{tpu_custom_call.1} parent=1 // pred_check
      _
    $region23: #{tpu_custom_call.1} parent=1 // pred_check_branch
      %46 = sbr.rel (0) target = $region25
    $region24: #{tpu_custom_call.1} parent=1 // pred_region
      %48 = dma.done [#allocation6], 128
    $region25: #{tpu_custom_call.1} parent=1 // pred_fallthru
      _
    %v49 = vld [vmem:[%s2] sm:$0x1]
    %v50 = vld [vmem:[%s3] sm:$0x1]
    %v51 = vld [vmem:[#allocation2] sm:$0xff]
    %v53 = vperm.slane %v49, 0
    %v55 = vsub.f32 %v51, %v53
    %v57 = vperm.slane %v50, 0
    %v59 = vmul.f32 %v55, %v57
    %60 = vst [vmem:[#allocation7] sm:$0xff] %v59
    %v61 = vld [vmem:[#allocation5] sm:$0xff]
    %v62 = vsub.f32 %v61, %v53
    %v63 = vmul.f32 %v62, %v57
    %64 = vst [vmem:[#allocation8] sm:$0xff] %v63
    // Predicated region
    $region26: #{tpu_custom_call.1} parent=1 // pred_check
      _
    $region27: #{tpu_custom_call.1} parent=1 // pred_check_branch
      %66 = sbr.rel (0) target = $region29
    $region28: #{tpu_custom_call.1} parent=1 // pred_region
      %68 = vsyncadd [#allocation4], 0
      %s70 = sshll.u32 [#allocation7], 4
      %s71 = int_to_ptr.vmem [resolvable:$true] %s70
      %s72 = sshll.u32 %s4, 4
      %s73 = int_to_ptr.hbm [resolvable:$true] %s72
      %75 = dma.vmem_to_hbm [thread:$0]  %s71, 128, %s73, [#allocation4]
    $region29: #{tpu_custom_call.1} parent=1 // pred_fallthru
      _
    // Predicated region
    $region30: #{tpu_custom_call.1} parent=1 // pred_check
      _
    $region31: #{tpu_custom_call.1} parent=1 // pred_check_branch
      %77 = sbr.rel (0) target = $region33
    $region32: #{tpu_custom_call.1} parent=1 // pred_region
      %79 = vsyncadd [#allocation9], 0
      %s81 = sshll.u32 [#allocation8], 4
      %s82 = int_to_ptr.vmem [resolvable:$true] %s81
      %s83 = sshll.u32 %s5, 4
      %s84 = int_to_ptr.hbm [resolvable:$true] %s83
      %86 = dma.vmem_to_hbm [thread:$0]  %s82, 128, %s84, [#allocation9]
    $region33: #{tpu_custom_call.1} parent=1 // pred_fallthru
      _
    // Predicated region
    $region34: #{tpu_custom_call.1} parent=1 // pred_check
      _
    $region35: #{tpu_custom_call.1} parent=1 // pred_check_branch
      %88 = sbr.rel (0) target = $region37
    $region36: #{tpu_custom_call.1} parent=1 // pred_region
      %90 = dma.done [#allocation4], 128
    $region37: #{tpu_custom_call.1} parent=1 // pred_fallthru
      _
    // Predicated region
    $region38: #{tpu_custom_call.1} parent=1 // pred_check
      _
    $region39: #{tpu_custom_call.1} parent=1 // pred_check_branch
      %92 = sbr.rel (0) target = $region41
    $region40: #{tpu_custom_call.1} parent=1 // pred_region
      %94 = dma.done [#allocation9], 128
    $region41: #{tpu_custom_call.1} parent=1 // pred_fallthru
      _
    %95 = vsyncpa [#allocation3], 1
    %96 = vsyncpa [#allocation6], 1
    %97 = vsyncpa [#allocation4], 1
    %98 = vsyncpa [#allocation9], 1

</llo_original>
